<compile_context>
chip_gen: v7x
topology: tpu7x:2x2x1
jax: 0.10.0
libtpu: 0.0.40
codegen_flags: <defaults>
</compile_context>

<pallas_src>
import math

import jax
import jax.numpy as jnp
from jax.experimental import pallas as pl
from jax.experimental.pallas import tpu as pltpu


def make_positional_encoding(max_seq_len: int, embedding_dim: int,
                             dtype=jnp.float32) -> jnp.ndarray:
    """Deterministic buffer construction (mirrors the PyTorch __init__)."""
    assert embedding_dim % 2 == 0, "embedding_dim must be even (as in the PyTorch module)"
    pos = jnp.arange(max_seq_len, dtype=jnp.float32)
    inv_freq = 1.0 / (10000.0 ** (2.0 * jnp.arange(embedding_dim // 2, dtype=jnp.float32)
                                  / embedding_dim))
    angles = jnp.outer(pos, inv_freq)                        # (max_seq_len, emb//2)
    pe = jnp.zeros((max_seq_len, embedding_dim), dtype=jnp.float32)
    pe = pe.at[:, 0::2].set(jnp.sin(angles))
    pe = pe.at[:, 1::2].set(jnp.cos(angles))
    return pe.astype(dtype)


def _pe_add_kernel(x_ref, pe_ref, o_ref):
    # x/o blocks are (tr, cols) (batch Squeezed) or (Bk, rows, cols) (batch-grouped);
    # pe block is always (tr/rows, cols).  The broadcast over the leading dim is
    # free on the VPU: the body stays one vld + vadd + vst per vreg.
    o_ref[...] = x_ref[...] + pe_ref[...]


def _vmem_capacity_bytes() -> int:
    """Physical per-core VMEM; conservative (v7x) fallback if the query fails."""
    try:
        cap = int(pltpu.get_tpu_info().vmem_capacity_bytes)
        if cap > 0:
            return cap
    except Exception:
        pass
    return 64 << 20


def positional_encoding_forward(x: jnp.ndarray, pe: jnp.ndarray) -> jnp.ndarray:
    """x: (batch, seq_len, embedding_dim) -> x + pe[:seq_len, :]."""
    batch, seq_len, emb = x.shape
    max_seq_len = pe.shape[0]
    assert seq_len <= max_seq_len, "seq_len exceeds max_seq_len of the pe buffer"

    # One-time dtype match so the in-kernel add has no up/down casts.
    if pe.dtype != x.dtype:
        pe = pe.astype(x.dtype)

    itemsize = jnp.dtype(x.dtype).itemsize
    sub = max(8, 32 // itemsize)          # sublane multiple: 8 f32, 16 bf16, 32 int8/fp8

    # ---- internal lane-dense layout: (batch, rows, cols), cols % 128 == 0 ----
    if emb % 128 == 0:
        fold = 1
        rows, cols = seq_len, emb
        x_in = x
        pe_in = pe                         # full buffer; index_map + masking slice it
        pe_is_full_buffer = True
    else:
        # Fold `fold` consecutive seq positions into the lane axis (pad seq up to
        # the fold multiple) so the last dim is a multiple of 128 -> unmasked vst.
        fold = 128 // math.gcd(emb, 128)
        pad_seq = (-seq_len) % fold
        x_p = jnp.pad(x, ((0, 0), (0, pad_seq), (0, 0))) if pad_seq else x
        pe_p = pe[:seq_len]
        if pad_seq:
            pe_p = jnp.pad(pe_p, ((0, pad_seq), (0, 0)))
        rows = (seq_len + pad_seq) // fold
        cols = emb * fold
        x_in = x_p.reshape(batch, rows, cols)
        pe_in = pe_p.reshape(rows, cols)
        pe_is_full_buffer = False

    row_bytes = cols * itemsize
    slab_bytes = rows * row_bytes          # one full (rows, cols) per-batch slab

    cap = _vmem_capacity_bytes()
    ws_budget = min(int(cap * 0.70), 64 << 20)   # live double-buffered working set
    TARGET_TILE = 4 << 20                        # ~2-4 MiB per DMA keeps >=85% roofline

    if slab_bytes <= (1 << 20) and batch > 1:
        # ---- small per-batch slab: group Bk batch entries per grid step ----
        if pe_is_full_buffer:
            pe_in = pe_in[:rows]           # pe block must be full-extent here
        bk_target = int(max(1, min(batch, TARGET_TILE // max(1, slab_bytes))))
        Bk = 1
        for d in range(bk_target, 0, -1):  # largest divisor of batch <= target
            if batch % d == 0:
                Bk = d
                break
        grid = (pl.cdiv(batch, Bk),)
        in_specs = [
            pl.BlockSpec((Bk, rows, cols), lambda b: (b, 0, 0)),
            pl.BlockSpec((rows, cols), lambda b: (0, 0)),
        ]
        out_specs = pl.BlockSpec((Bk, rows, cols), lambda b: (b, 0, 0))
        dims = ("parallel",)
        ws_bytes = 4 * Bk * slab_bytes + 2 * slab_bytes
    else:
        # ---- general path: seq axis tiled by bytes, one batch per inner step ----
        if rows < sub:
            tr = rows                      # full-extent block on a tiny seq axis
            if pe_is_full_buffer:
                pe_in = pe_in[:rows]       # pe block must be full-extent too
        else:
            tr = max(sub, min(rows, TARGET_TILE // max(1, row_bytes)))
            while tr > sub and 6 * tr * row_bytes > ws_budget:
                tr //= 2
            tr = max(sub, (tr // sub) * sub)   # edge blocks handled by masking
        grid = (pl.cdiv(rows, tr), batch)  # batch innermost: pe block constant -> no re-DMA
        in_specs = [
            pl.BlockSpec((pl.Squeezed(), tr, cols), lambda s, b: (b, s, 0)),
            pl.BlockSpec((tr, cols), lambda s, b: (s, 0)),
        ]
        out_specs = pl.BlockSpec((pl.Squeezed(), tr, cols), lambda s, b: (b, s, 0))
        dims = ("parallel", "parallel")
        ws_bytes = 6 * tr * row_bytes

    vmem_limit = int(min(max(ws_bytes + (8 << 20), 32 << 20), int(cap * 0.85)))

    out = pl.pallas_call(
        _pe_add_kernel,
        out_shape=jax.ShapeDtypeStruct((batch, rows, cols), x.dtype),
        grid_spec=pltpu.PrefetchScalarGridSpec(
            num_scalar_prefetch=0,
            grid=grid,
            in_specs=in_specs,
            out_specs=out_specs,
        ),
        compiler_params=pltpu.CompilerParams(
            dimension_semantics=dims,
            vmem_limit_bytes=vmem_limit,
        ),
    )(x_in, pe_in)

    if fold > 1:
        out = out.reshape(batch, rows * fold, emb)[:, :seq_len, :]
    return out


if __name__ == "__main__":
    key = jax.random.PRNGKey(0)

    # Shapes implied by the module's forward: (batch, seq_len, embedding_dim).
    batch, seq_len, emb = 2, 8, 32
    max_seq_len = 16
    x = jax.random.normal(key, (batch, seq_len, emb), dtype=jnp.float32)
    pe = make_positional_encoding(max_seq_len, emb)
    out = jax.block_until_ready(positional_encoding_forward(x, pe))
    ref = x + pe[:seq_len, :][None, :, :]
    assert out.shape == (batch, seq_len, emb)
    assert jnp.allclose(out, ref, atol=1e-6), "mismatch vs reference (fold path)"

    # Second tiny check: lane-dense emb, seq_len not a multiple of 8.
    b2, s2, e2, m2 = 2, 12, 128, 32
    x2 = jax.random.normal(jax.random.PRNGKey(1), (b2, s2, e2), dtype=jnp.float32)
    pe2 = make_positional_encoding(m2, e2)
    out2 = jax.block_until_ready(positional_encoding_forward(x2, pe2))
    ref2 = x2 + pe2[:s2, :][None, :, :]
    assert out2.shape == (b2, s2, e2)
    assert jnp.allclose(out2, ref2, atol=1e-6), "mismatch vs reference (dense path)"

    print("KERNEL_OK")
</pallas_src>

<mosaic_0001>
module attributes {stable_mosaic.version = 11 : i64} {
  func.func @_pe_add_kernel(%arg0: i32, %arg1: memref<2x2x128xf32, #tpu.memory_space<vmem>>, %arg2: memref<2x128xf32, #tpu.memory_space<vmem>>, %arg3: memref<2x2x128xf32, #tpu.memory_space<vmem>>) attributes {dimension_semantics = [#tpu.dimension_semantics<parallel>], iteration_bounds = array<i64: 1>, scalar_prefetch = 0 : i64, scratch_operands = 0 : i64, tpu.core_type = #tpu.core_type<tc>, window_params = [{transform_indices = @transform_0, window_bounds = array<i64: 2, 2, 128>}, {pipeline_mode = #tpu.pipeline_mode<synchronous>, transform_indices = @transform_1, window_bounds = array<i64: 2, 128>}, {transform_indices = @transform_2, window_bounds = array<i64: 2, 2, 128>}]} {
    %c0 = arith.constant 0 : index
    %c0_0 = arith.constant 0 : index
    %c0_1 = arith.constant 0 : index
    %0 = vector.load %arg1[%c0, %c0_0, %c0_1] : memref<2x2x128xf32, #tpu.memory_space<vmem>>, vector<2x2x128xf32>
    %c0_2 = arith.constant 0 : index
    %c0_3 = arith.constant 0 : index
    %1 = vector.load %arg2[%c0_2, %c0_3] : memref<2x128xf32, #tpu.memory_space<vmem>>, vector<2x128xf32>
    %2 = vector.shape_cast %1 : vector<2x128xf32> to vector<1x2x128xf32>
    %3 = vector.broadcast %2 : vector<1x2x128xf32> to vector<2x2x128xf32>
    %4 = arith.addf %0, %3 : vector<2x2x128xf32>
    %c0_4 = arith.constant 0 : index
    %c0_5 = arith.constant 0 : index
    %c0_6 = arith.constant 0 : index
    %5 = vector.load %arg3[%c0_4, %c0_5, %c0_6] : memref<2x2x128xf32, #tpu.memory_space<vmem>>, vector<2x2x128xf32>
    tpu.vector_store %arg3[%c0_4, %c0_5, %c0_6], %4 {strides = array<i32>} : memref<2x2x128xf32, #tpu.memory_space<vmem>>, vector<2x2x128xf32>,
    return
  }
  func.func @transform_0(%arg0: i32) -> (i32, i32, i32) {
    %c0_i32 = arith.constant 0 : i32
    %c0_i32_0 = arith.constant 0 : i32
    %c0_i32_1 = arith.constant 0 : i32
    return %arg0, %c0_i32, %c0_i32_0 : i32, i32, i32
  }
  func.func @transform_1(%arg0: i32) -> (i32, i32) {
    %c0_i32 = arith.constant 0 : i32
    %c0_i32_0 = arith.constant 0 : i32
    %c0_i32_1 = arith.constant 0 : i32
    return %c0_i32, %c0_i32_0 : i32, i32
  }
  func.func @transform_2(%arg0: i32) -> (i32, i32, i32) {
    %c0_i32 = arith.constant 0 : i32
    %c0_i32_0 = arith.constant 0 : i32
    %c0_i32_1 = arith.constant 0 : i32
    return %arg0, %c0_i32, %c0_i32_0 : i32, i32, i32
  }
}

</mosaic_0001>

<llo_original>
// kernel: tpu_custom_call.1
$region0: #{tpu_custom_call.1}
  #allocation0 [shape = 'u32[]', space=smem, size = 0x4, offset = 0x4, fixed_abs, tag = 'smem constant byte address 0x4 - core index']
  #allocation1 [shape = 'u32[144,128]{1,0:T(1,128)}', space=vmem, size = 0x12000, scoped, tag = 'internal scratch']
  %s0 = inlined_call_operand.hbm [shape: f32[2,2,128], index: 0, kind: input, shape index: {}]
  %s1 = inlined_call_operand.vmem [shape: f32[2,128], index: 1, kind: input, shape index: {}]
  %s2 = inlined_call_operand.hbm [shape: f32[2,2,128], index: 2, kind: output, shape index: {}]
  %s3 = sld [smem:[#allocation0]]
  $region22: #{tpu_custom_call.1} parent=0
    _
  %s5 = ssub.s32 1, %s3
  %s6 = scalar_select 0, %s5, %s3
  $region1: #{tpu_custom_call.1} parent=0
    #allocation2 [shape = 'u8[2048]{0}', space=vmem, size = 0x800, scoped, tag = 'input window, operand 0, single buffered']
    #allocation3 [shape = 's32[1]{0}', space=sflag, size = 0x4, scoped, tag = 'scoped memory for tpu_custom_call.1']
    #allocation4 [shape = 's32[1]{0}', space=sflag, size = 0x4, scoped, tag = 'scoped memory for tpu_custom_call.1']
    #allocation5 [shape = 'u8[2048]{0}', space=vmem, size = 0x800, scoped, tag = 'output window, operand 0, single buffered']
    %7 = vsyncpa [#allocation3], 0
    %8 = vsyncpa [#allocation4], 0
    // Predicated region
    $region2: #{tpu_custom_call.1} parent=1 // pred_check
      _
    $region3: #{tpu_custom_call.1} parent=1 // pred_check_branch
      %10 = sbr.rel (0) target = $region5
    $region4: #{tpu_custom_call.1} parent=1 // pred_region
      %s12 = ssub.s32 64, 64
      %13 = vsyncadd [#allocation3], %s12
      %s14 = sshll.u32 [#allocation2], 4
      %s15 = int_to_ptr.vmem [resolvable:$true] %s14
      %20 = dma.hbm_to_vmem [thread:$0]  %s0, 64, %s15, [#allocation3], 32, 32, 2
    $region5: #{tpu_custom_call.1} parent=1 // pred_fallthru
      _
    // Predicated region
    $region6: #{tpu_custom_call.1} parent=1 // pred_check
      _
    $region7: #{tpu_custom_call.1} parent=1 // pred_check_branch
      %22 = sbr.rel (0) target = $region9
    $region8: #{tpu_custom_call.1} parent=1 // pred_region
      _
    $region9: #{tpu_custom_call.1} parent=1 // pred_fallthru
      _
    // Predicated region
    $region10: #{tpu_custom_call.1} parent=1 // pred_check
      _
    $region11: #{tpu_custom_call.1} parent=1 // pred_check_branch
      %24 = sbr.rel (0) target = $region13
    $region12: #{tpu_custom_call.1} parent=1 // pred_region
      %25 = dma.done [#allocation3], 64
    $region13: #{tpu_custom_call.1} parent=1 // pred_fallthru
      _
    %v26 = vld [vmem:[#allocation2] sm:$0x3]
    %v27 = vld [vmem:[#allocation2 + $0x2] sm:$0x3]
    %v28 = vld [vmem:[%s1] sm:$0x3]
    %v29 = vadd.f32 %v26, %v28
    %v30 = vadd.f32 %v27, %v28
    %31 = vst [vmem:[#allocation5] sm:$0x3] %v29
    %32 = vst [vmem:[#allocation5 + $0x2] sm:$0x3] %v30
    // Predicated region
    $region14: #{tpu_custom_call.1} parent=1 // pred_check
      _
    $region15: #{tpu_custom_call.1} parent=1 // pred_check_branch
      %34 = sbr.rel (0) target = $region17
    $region16: #{tpu_custom_call.1} parent=1 // pred_region
      %s36 = ssub.s32 64, 64
      %37 = vsyncadd [#allocation4], %s36
      %s38 = sshll.u32 [#allocation5], 4
      %s39 = int_to_ptr.vmem [resolvable:$true] %s38
      %44 = dma.vmem_to_hbm [thread:$0]  %s39, 64, %s2, [#allocation4], 32, 32, 2
    $region17: #{tpu_custom_call.1} parent=1 // pred_fallthru
      _
    // Predicated region
    $region18: #{tpu_custom_call.1} parent=1 // pred_check
      _
    $region19: #{tpu_custom_call.1} parent=1 // pred_check_branch
      %46 = sbr.rel (0) target = $region21
    $region20: #{tpu_custom_call.1} parent=1 // pred_region
      %47 = dma.done [#allocation4], 64
    $region21: #{tpu_custom_call.1} parent=1 // pred_fallthru
      _
    %48 = vsyncpa [#allocation3], 1
    %49 = vsyncpa [#allocation4], 1

</llo_original>
